<compile_context>
chip_gen: v6e
topology: v6e:2x2x1
jax: 0.10.0
libtpu: 0.0.40
codegen_flags: <defaults>
</compile_context>

<pallas_src>
from functools import partial

import jax
import jax.numpy as jnp
from jax.experimental import pallas as pl
from jax.experimental.pallas import tpu as pltpu


def _round_up(x: int, m: int) -> int:
    return ((x + m - 1) // m) * m


def _cdiv(a: int, b: int) -> int:
    return -(-a // b)


def _fused_mlp_kernel(*refs, n_layers: int):
    """Fused packed MLP: h = x; h = relu(h @ Wj + bj) for j < L-1; y = h @ W_{L-1} + b.

    refs = (x_ref, w0_ref, b0_ref, w1_ref, b1_ref, ..., o_ref)
    Weights/biases are VMEM-resident (constant index_map); only the final
    (TB_rows, P*Dout) tile is stored.
    """
    x_ref = refs[0]
    o_ref = refs[-1]

    h = x_ref[...].astype(jnp.float32)
    for j in range(n_layers):
        w = refs[1 + 2 * j][...]
        b = refs[2 + 2 * j][...]            # (1, P*Dout_j) f32, broadcasts over rows
        lhs = h.astype(w.dtype) if w.dtype != h.dtype else h
        h = jnp.dot(lhs, w, preferred_element_type=jnp.float32) + b
        if j != n_layers - 1:
            h = jnp.maximum(h, 0.0)         # ReLU in f32 (v5e-friendly)
    o_ref[...] = h.astype(o_ref.dtype)


def densenet_forward(x, params, *, pack: int = 8, max_batch_tile: int = 8192,
                     use_bf16_matmul: bool = False):
    """DenseNet.forward as one fused pallas_call with block-diagonal row packing.

    x:      (B, Din) float32
    params: list of (w, b) with w: (Din_j, Dout_j) float32 (already transposed
            from PyTorch's (out, in)), b: (Dout_j,) float32
    pack:   rows packed per "super-row" (8 for v6e/v7x, 4 for v5e,
            16 for a fully 128-lane-dense output store).
    """
    assert len(params) >= 1
    n_layers = len(params)
    B, Din = x.shape
    assert params[0][0].shape[0] == Din
    Dout = params[-1][0].shape[1]
    P = int(pack)
    assert P >= 1

    # ---------------- batch tiling over PACKED rows ----------------
    align = 8 * P                                   # real rows per sublane group
    R0 = _round_up(B, align) // P                   # packed rows before tile rounding
    target_rows = max(8, ((max_batch_tile // P) // 8) * 8)
    n_tiles = _cdiv(R0, target_rows)
    if n_tiles == 1 and R0 >= 16:
        n_tiles = 2                                 # v7x: let 'parallel' use both TCs
    tb_rows = _round_up(_cdiv(R0, n_tiles), 8)      # packed rows per tile (mult of 8)
    R = n_tiles * tb_rows                           # total packed rows
    B_pad = R * P

    if B_pad != B:
        # Bounded waste: <= 8*P - 1 rows of alignment + ~8 rows/tile of round-up.
        # TODO(synk): a ragged last tile with masked stores would avoid this copy.
        x = jnp.pad(x, ((0, B_pad - B), (0, 0)))
    xp = x.reshape(R, P * Din)                      # contiguous -> metadata-only

    # ---------------- packed (block-diagonal) parameters ----------------
    mm_dtype = jnp.bfloat16 if use_bf16_matmul else jnp.float32
    inputs = [xp]
    in_specs = [pl.BlockSpec((tb_rows, P * Din), lambda i: (i, 0))]
    flops = 0
    param_bytes = 0
    max_width = max(P * Din, P * Dout)
    for (w, b) in params:
        din_j, dout_j = w.shape
        w_bd = jnp.kron(jnp.eye(P, dtype=w.dtype), w).astype(mm_dtype)   # (P*din, P*dout)
        b_t = jnp.tile(b, P).reshape(1, P * dout_j).astype(jnp.float32)  # (1, P*dout)
        in_specs.append(pl.BlockSpec((P * din_j, P * dout_j), lambda i: (0, 0)))
        in_specs.append(pl.BlockSpec((1, P * dout_j), lambda i: (0, 0)))
        inputs.append(w_bd)
        inputs.append(b_t)
        flops += 2 * R * (P * din_j) * (P * dout_j)
        param_bytes += w_bd.dtype.itemsize * w_bd.size + 4 * b_t.size
        max_width = max(max_width, P * dout_j)
    out_spec = pl.BlockSpec((tb_rows, P * Dout), lambda i: (i, 0))

    # ---------------- cost estimate (advisory) ----------------
    bytes_accessed = 4 * (B_pad * Din + B_pad * Dout) + param_bytes
    cost = pl.CostEstimate(flops=flops, transcendentals=0,
                           bytes_accessed=bytes_accessed)

    # ---------------- tight VMEM budget ----------------
    io_bytes = 2 * 4 * tb_rows * (P * Din) + 2 * 4 * tb_rows * (P * Dout)  # dbl-buffered tiles
    act_bytes = 2 * 4 * tb_rows * max_width            # intermediate activations (f32)
    vmem_est = io_bytes + act_bytes + 2 * param_bytes
    vmem_limit = int(min(max(2 * vmem_est, 4 * 1024 * 1024), 64 * 1024 * 1024))

    out = pl.pallas_call(
        partial(_fused_mlp_kernel, n_layers=n_layers),
        out_shape=jax.ShapeDtypeStruct((R, P * Dout), jnp.float32),
        grid=(n_tiles,),
        in_specs=in_specs,
        out_specs=out_spec,
        compiler_params=pltpu.CompilerParams(
            dimension_semantics=("parallel",),
            vmem_limit_bytes=vmem_limit,
        ),
        cost_estimate=cost,
    )(*inputs)

    out = out.reshape(B_pad, Dout)                  # contiguous -> metadata-only
    if B_pad != B:
        out = out[:B]                               # drop padded (garbage) rows
    return out


def init_densenet_params(layers, key):
    """Deterministic init mirroring nn.Linear's default U(-1/sqrt(fan_in), ...)."""
    params = []
    for j in range(len(layers) - 1):
        fan_in, fan_out = layers[j], layers[j + 1]
        key, kw, kb = jax.random.split(key, 3)
        bound = 1.0 / jnp.sqrt(jnp.float32(fan_in))
        # Stored directly in (in, out) layout (transposed vs. PyTorch's (out, in)).
        w = jax.random.uniform(kw, (fan_in, fan_out), jnp.float32, -bound, bound)
        b = jax.random.uniform(kb, (fan_out,), jnp.float32, -bound, bound)
        params.append((w, b))
    return params


def _reference(x, params):
    h = x
    for j, (w, b) in enumerate(params):
        h = h @ w + b
        if j != len(params) - 1:
            h = jnp.maximum(h, 0.0)
    return h


if __name__ == "__main__":
    # DenseNet(layers=[16, 32, 32, 8], nonlinearity=nn.ReLU)
    layers = [16, 32, 32, 8]

    key = jax.random.PRNGKey(0)
    params = init_densenet_params(layers, key)

    # Small aligned batch.
    key, kx = jax.random.split(key)
    x = jax.random.normal(kx, (8, layers[0]), dtype=jnp.float32)
    out = jax.block_until_ready(densenet_forward(x, params))
    ref = _reference(x, params)
    assert out.shape == (8, layers[-1])
    assert jnp.allclose(out, ref, atol=1e-4, rtol=1e-4)

    # Ragged batch exercises the (bounded) padding path.
    key, kx2 = jax.random.split(key)
    x2 = jax.random.normal(kx2, (37, layers[0]), dtype=jnp.float32)
    out2 = jax.block_until_ready(densenet_forward(x2, params))
    ref2 = _reference(x2, params)
    assert out2.shape == (37, layers[-1])
    assert jnp.allclose(out2, ref2, atol=1e-4, rtol=1e-4)

    print("KERNEL_OK")
</pallas_src>

<mosaic_0001>
module attributes {stable_mosaic.version = 11 : i64} {
  func.func @_fused_mlp_kernel(%arg0: i32, %arg1: memref<8x128xf32, #tpu.memory_space<vmem>>, %arg2: memref<128x256xf32, #tpu.memory_space<vmem>>, %arg3: memref<1x256xf32, #tpu.memory_space<vmem>>, %arg4: memref<256x256xf32, #tpu.memory_space<vmem>>, %arg5: memref<1x256xf32, #tpu.memory_space<vmem>>, %arg6: memref<256x64xf32, #tpu.memory_space<vmem>>, %arg7: memref<1x64xf32, #tpu.memory_space<vmem>>, %arg8: memref<8x64xf32, #tpu.memory_space<vmem>>) attributes {dimension_semantics = [#tpu.dimension_semantics<parallel>], iteration_bounds = array<i64: 1>, scalar_prefetch = 0 : i64, scratch_operands = 0 : i64, tpu.core_type = #tpu.core_type<tc>, window_params = [{transform_indices = @transform_0, window_bounds = array<i64: 8, 128>}, {pipeline_mode = #tpu.pipeline_mode<synchronous>, transform_indices = @transform_1, window_bounds = array<i64: 128, 256>}, {pipeline_mode = #tpu.pipeline_mode<synchronous>, transform_indices = @transform_2, window_bounds = array<i64: 1, 256>}, {pipeline_mode = #tpu.pipeline_mode<synchronous>, transform_indices = @transform_3, window_bounds = array<i64: 256, 256>}, {pipeline_mode = #tpu.pipeline_mode<synchronous>, transform_indices = @transform_4, window_bounds = array<i64: 1, 256>}, {pipeline_mode = #tpu.pipeline_mode<synchronous>, transform_indices = @transform_5, window_bounds = array<i64: 256, 64>}, {pipeline_mode = #tpu.pipeline_mode<synchronous>, transform_indices = @transform_6, window_bounds = array<i64: 1, 64>}, {transform_indices = @transform_7, window_bounds = array<i64: 8, 64>}]} {
    %c0 = arith.constant 0 : index
    %c0_0 = arith.constant 0 : index
    %0 = vector.load %arg1[%c0, %c0_0] : memref<8x128xf32, #tpu.memory_space<vmem>>, vector<8x128xf32>
    %c0_1 = arith.constant 0 : index
    %c0_2 = arith.constant 0 : index
    %1 = vector.load %arg2[%c0_1, %c0_2] : memref<128x256xf32, #tpu.memory_space<vmem>>, vector<128x256xf32>
    %c0_3 = arith.constant 0 : index
    %c0_4 = arith.constant 0 : index
    %2 = vector.load %arg3[%c0_3, %c0_4] : memref<1x256xf32, #tpu.memory_space<vmem>>, vector<1x256xf32>
    %cst = arith.constant dense<0.000000e+00> : vector<8x256xf32>
    %3 = tpu.matmul %0, %1, %cst {dimension_numbers = #tpu.dot_dimension_numbers<[1], [0], [0], [1], [0, 0, 1, 1], [], []>} : vector<8x128xf32>, vector<128x256xf32>, vector<8x256xf32> -> vector<8x256xf32>
    %4 = vector.broadcast %2 : vector<1x256xf32> to vector<8x256xf32>
    %5 = arith.addf %3, %4 : vector<8x256xf32>
    %cst_5 = arith.constant 0.000000e+00 : f32
    %6 = vector.broadcast %cst_5 : f32 to vector<8x256xf32>
    %7 = arith.maximumf %5, %6 : vector<8x256xf32>
    %c0_6 = arith.constant 0 : index
    %c0_7 = arith.constant 0 : index
    %8 = vector.load %arg4[%c0_6, %c0_7] : memref<256x256xf32, #tpu.memory_space<vmem>>, vector<256x256xf32>
    %c0_8 = arith.constant 0 : index
    %c0_9 = arith.constant 0 : index
    %9 = vector.load %arg5[%c0_8, %c0_9] : memref<1x256xf32, #tpu.memory_space<vmem>>, vector<1x256xf32>
    %cst_10 = arith.constant dense<0.000000e+00> : vector<8x256xf32>
    %10 = tpu.matmul %7, %8, %cst_10 {dimension_numbers = #tpu.dot_dimension_numbers<[1], [0], [0], [1], [0, 0, 1, 1], [], []>} : vector<8x256xf32>, vector<256x256xf32>, vector<8x256xf32> -> vector<8x256xf32>
    %11 = vector.broadcast %9 : vector<1x256xf32> to vector<8x256xf32>
    %12 = arith.addf %10, %11 : vector<8x256xf32>
    %cst_11 = arith.constant 0.000000e+00 : f32
    %13 = vector.broadcast %cst_11 : f32 to vector<8x256xf32>
    %14 = arith.maximumf %12, %13 : vector<8x256xf32>
    %c0_12 = arith.constant 0 : index
    %c0_13 = arith.constant 0 : index
    %15 = vector.load %arg6[%c0_12, %c0_13] : memref<256x64xf32, #tpu.memory_space<vmem>>, vector<256x64xf32>
    %c0_14 = arith.constant 0 : index
    %c0_15 = arith.constant 0 : index
    %16 = vector.load %arg7[%c0_14, %c0_15] : memref<1x64xf32, #tpu.memory_space<vmem>>, vector<1x64xf32>
    %cst_16 = arith.constant dense<0.000000e+00> : vector<8x64xf32>
    %17 = tpu.matmul %14, %15, %cst_16 {dimension_numbers = #tpu.dot_dimension_numbers<[1], [0], [0], [1], [0, 0, 1, 1], [], []>} : vector<8x256xf32>, vector<256x64xf32>, vector<8x64xf32> -> vector<8x64xf32>
    %18 = vector.broadcast %16 : vector<1x64xf32> to vector<8x64xf32>
    %19 = arith.addf %17, %18 : vector<8x64xf32>
    %c0_17 = arith.constant 0 : index
    %c0_18 = arith.constant 0 : index
    %20 = vector.load %arg8[%c0_17, %c0_18] : memref<8x64xf32, #tpu.memory_space<vmem>>, vector<8x64xf32>
    tpu.vector_store %arg8[%c0_17, %c0_18], %19 {strides = array<i32>} : memref<8x64xf32, #tpu.memory_space<vmem>>, vector<8x64xf32>,
    return
  }
  func.func @transform_0(%arg0: i32) -> (i32, i32) {
    %c0_i32 = arith.constant 0 : i32
    %c0_i32_0 = arith.constant 0 : i32
    return %arg0, %c0_i32 : i32, i32
  }
  func.func @transform_1(%arg0: i32) -> (i32, i32) {
    %c0_i32 = arith.constant 0 : i32
    %c0_i32_0 = arith.constant 0 : i32
    %c0_i32_1 = arith.constant 0 : i32
    return %c0_i32, %c0_i32_0 : i32, i32
  }
  func.func @transform_2(%arg0: i32) -> (i32, i32) {
    %c0_i32 = arith.constant 0 : i32
    %c0_i32_0 = arith.constant 0 : i32
    %c0_i32_1 = arith.constant 0 : i32
    return %c0_i32, %c0_i32_0 : i32, i32
  }
  func.func @transform_3(%arg0: i32) -> (i32, i32) {
    %c0_i32 = arith.constant 0 : i32
    %c0_i32_0 = arith.constant 0 : i32
    %c0_i32_1 = arith.constant 0 : i32
    return %c0_i32, %c0_i32_0 : i32, i32
  }
  func.func @transform_4(%arg0: i32) -> (i32, i32) {
    %c0_i32 = arith.constant 0 : i32
    %c0_i32_0 = arith.constant 0 : i32
    %c0_i32_1 = arith.constant 0 : i32
    return %c0_i32, %c0_i32_0 : i32, i32
  }
  func.func @transform_5(%arg0: i32) -> (i32, i32) {
    %c0_i32 = arith.constant 0 : i32
    %c0_i32_0 = arith.constant 0 : i32
    %c0_i32_1 = arith.constant 0 : i32
    return %c0_i32, %c0_i32_0 : i32, i32
  }
  func.func @transform_6(%arg0: i32) -> (i32, i32) {
    %c0_i32 = arith.constant 0 : i32
    %c0_i32_0 = arith.constant 0 : i32
    %c0_i32_1 = arith.constant 0 : i32
    return %c0_i32, %c0_i32_0 : i32, i32
  }
  func.func @transform_7(%arg0: i32) -> (i32, i32) {
    %c0_i32 = arith.constant 0 : i32
    %c0_i32_0 = arith.constant 0 : i32
    return %arg0, %c0_i32 : i32, i32
  }
}

</mosaic_0001>

<llo_original>
// kernel: tpu_custom_call.1
$region0: #{tpu_custom_call.1}
  #allocation0 [shape = 'u32[]', space=smem, size = 0x4, offset = 0x4, fixed_abs, tag = 'smem constant byte address 0x4 - core index']
  #allocation1 [shape = 'u32[144,128]{1,0:T(1,128)}', space=vmem, size = 0x12000, scoped, tag = 'internal scratch']
  %s0 = inlined_call_operand.vmem [shape: f32[8,128], index: 0, kind: input, shape index: {}]
  %s1 = inlined_call_operand.vmem [shape: f32[128,256], index: 1, kind: input, shape index: {}]
  %s2 = inlined_call_operand.vmem [shape: f32[1,256], index: 2, kind: input, shape index: {}]
  %s3 = inlined_call_operand.hbm [shape: f32[256,256], index: 3, kind: input, shape index: {}]
  %s4 = inlined_call_operand.vmem [shape: f32[1,256], index: 4, kind: input, shape index: {}]
  %s5 = inlined_call_operand.vmem [shape: f32[256,64], index: 5, kind: input, shape index: {}]
  %s6 = inlined_call_operand.vmem [shape: f32[1,64], index: 6, kind: input, shape index: {}]
  %s7 = inlined_call_operand.hbm [shape: f32[8,64], index: 7, kind: output, shape index: {}]
  %s8 = sld [smem:[#allocation0]]
  $region42: #{tpu_custom_call.1} parent=0
    _
  %s10 = ssub.s32 1, %s8
  %s11 = scalar_select 0, %s10, %s8
  $region1: #{tpu_custom_call.1} parent=0
    #allocation2 [shape = 'u8[262144]{0}', space=vmem, size = 0x40000, scoped, tag = 'input window, operand 3, single buffered']
    #allocation3 [shape = 's32[1]{0}', space=sflag, size = 0x4, scoped, tag = 'scoped memory for tpu_custom_call.1']
    #allocation4 [shape = 's32[1]{0}', space=sflag, size = 0x4, scoped, tag = 'scoped memory for tpu_custom_call.1']
    #allocation5 [shape = 'u8[4096]{0}', space=vmem, size = 0x1000, scoped, tag = 'output window, operand 0, single buffered']
    %12 = vsyncpa [#allocation3], 0
    %13 = vsyncpa [#allocation4], 0
    // Predicated region
    $region2: #{tpu_custom_call.1} parent=1 // pred_check
      _
    $region3: #{tpu_custom_call.1} parent=1 // pred_check_branch
      %15 = sbr.rel (0) target = $region5
    $region4: #{tpu_custom_call.1} parent=1 // pred_region
      _
    $region5: #{tpu_custom_call.1} parent=1 // pred_fallthru
      _
    // Predicated region
    $region6: #{tpu_custom_call.1} parent=1 // pred_check
      _
    $region7: #{tpu_custom_call.1} parent=1 // pred_check_branch
      %17 = sbr.rel (0) target = $region9
    $region8: #{tpu_custom_call.1} parent=1 // pred_region
      _
    $region9: #{tpu_custom_call.1} parent=1 // pred_fallthru
      _
    // Predicated region
    $region10: #{tpu_custom_call.1} parent=1 // pred_check
      _
    $region11: #{tpu_custom_call.1} parent=1 // pred_check_branch
      %19 = sbr.rel (0) target = $region13
    $region12: #{tpu_custom_call.1} parent=1 // pred_region
      _
    $region13: #{tpu_custom_call.1} parent=1 // pred_fallthru
      _
    // Predicated region
    $region14: #{tpu_custom_call.1} parent=1 // pred_check
      _
    $region15: #{tpu_custom_call.1} parent=1 // pred_check_branch
      %21 = sbr.rel (0) target = $region17
    $region16: #{tpu_custom_call.1} parent=1 // pred_region
      %s23 = ssub.s32 8192, 8192
      %24 = vsyncadd [#allocation3], %s23
      %s25 = sshll.u32 [#allocation2], 4
      %s26 = int_to_ptr.vmem [resolvable:$true] %s25
      %31 = dma.hbm_to_vmem [thread:$0]  %s3, 8192, %s26, [#allocation3], 256, 256, 16
    $region17: #{tpu_custom_call.1} parent=1 // pred_fallthru
      _
    // Predicated region
    $region18: #{tpu_custom_call.1} parent=1 // pred_check
      _
    $region19: #{tpu_custom_call.1} parent=1 // pred_check_branch
      %33 = sbr.rel (0) target = $region21
    $region20: #{tpu_custom_call.1} parent=1 // pred_region
      _
    $region21: #{tpu_custom_call.1} parent=1 // pred_fallthru
      _
    // Predicated region
    $region22: #{tpu_custom_call.1} parent=1 // pred_check
      _
    $region23: #{tpu_custom_call.1} parent=1 // pred_check_branch
      %35 = sbr.rel (0) target = $region25
    $region24: #{tpu_custom_call.1} parent=1 // pred_region
      _
    $region25: #{tpu_custom_call.1} parent=1 // pred_fallthru
      _
    // Predicated region
    $region26: #{tpu_custom_call.1} parent=1 // pred_check
      _
    $region27: #{tpu_custom_call.1} parent=1 // pred_check_branch
      %37 = sbr.rel (0) target = $region29
    $region28: #{tpu_custom_call.1} parent=1 // pred_region
      _
    $region29: #{tpu_custom_call.1} parent=1 // pred_fallthru
      _
    // Predicated region
    $region30: #{tpu_custom_call.1} parent=1 // pred_check
      _
    $region31: #{tpu_custom_call.1} parent=1 // pred_check_branch
      %39 = sbr.rel (0) target = $region33
    $region32: #{tpu_custom_call.1} parent=1 // pred_region
      %40 = dma.done [#allocation3], 8192
    $region33: #{tpu_custom_call.1} parent=1 // pred_fallthru
      _
    %v41 = vld [vmem:[%s0] sm:$0xff]
    %v42 = vld [vmem:[%s1] sm:$0xff]
    %v43 = vld [vmem:[%s1 + $0x8] sm:$0xff]
    %v44 = vld [vmem:[%s1 + $0x10] sm:$0xff]
    %v45 = vld [vmem:[%s1 + $0x18] sm:$0xff]
    %v46 = vld [vmem:[%s1 + $0x20] sm:$0xff]
    %v47 = vld [vmem:[%s1 + $0x28] sm:$0xff]
    %v48 = vld [vmem:[%s1 + $0x30] sm:$0xff]
    %v49 = vld [vmem:[%s1 + $0x38] sm:$0xff]
    %v50 = vld [vmem:[%s1 + $0x40] sm:$0xff]
    %v51 = vld [vmem:[%s1 + $0x48] sm:$0xff]
    %v52 = vld [vmem:[%s1 + $0x50] sm:$0xff]
    %v53 = vld [vmem:[%s1 + $0x58] sm:$0xff]
    %v54 = vld [vmem:[%s1 + $0x60] sm:$0xff]
    %v55 = vld [vmem:[%s1 + $0x68] sm:$0xff]
    %v56 = vld [vmem:[%s1 + $0x70] sm:$0xff]
    %v57 = vld [vmem:[%s1 + $0x78] sm:$0xff]
    %v58 = vld [vmem:[%s1 + $0x80] sm:$0xff]
    %v59 = vld [vmem:[%s1 + $0x88] sm:$0xff]
    %v60 = vld [vmem:[%s1 + $0x90] sm:$0xff]
    %v61 = vld [vmem:[%s1 + $0x98] sm:$0xff]
    %v62 = vld [vmem:[%s1 + $0xa0] sm:$0xff]
    %v63 = vld [vmem:[%s1 + $0xa8] sm:$0xff]
    %v64 = vld [vmem:[%s1 + $0xb0] sm:$0xff]
    %v65 = vld [vmem:[%s1 + $0xb8] sm:$0xff]
    %v66 = vld [vmem:[%s1 + $0xc0] sm:$0xff]
    %v67 = vld [vmem:[%s1 + $0xc8] sm:$0xff]
    %v68 = vld [vmem:[%s1 + $0xd0] sm:$0xff]
    %v69 = vld [vmem:[%s1 + $0xd8] sm:$0xff]
    %v70 = vld [vmem:[%s1 + $0xe0] sm:$0xff]
    %v71 = vld [vmem:[%s1 + $0xe8] sm:$0xff]
    %v72 = vld [vmem:[%s1 + $0xf0] sm:$0xff]
    %v73 = vld [vmem:[%s1 + $0xf8] sm:$0xff]
    %v74 = vld [vmem:[%s2] sm:$0x3]
    %v76 = vlaneseq
    %v77 = vshrl.u32 %v76, 7
    %v78 = vsub.s32 0, %v77
    %v79 = vrot.slane %v74, %v78
    %v80 = vlaneseq
    %v81 = vshrl.u32 %v80, 7
    %v82 = vsub.s32 1, %v81
    %v83 = vrot.slane %v74, %v82
    %86 = vmatprep.subr.mxu0 %v73
    %87 = vmatpush1.msra.mxu0 %v72
    %88 = vmatprep.subr.mxu0 %v71
    %89 = vmatpush1.msra.mxu0 %v70
    %90 = vmatprep.subr.mxu0 %v69
    %91 = vmatpush1.msra.mxu0 %v68
    %92 = vmatprep.subr.mxu0 %v67
    %93 = vmatpush1.msra.mxu0 %v66
    %94 = vmatprep.subr.mxu0 %v65
    %95 = vmatpush1.msra.mxu0 %v64
    %96 = vmatprep.subr.mxu0 %v63
    %97 = vmatpush1.msra.mxu0 %v62
    %98 = vmatprep.subr.mxu0 %v61
    %99 = vmatpush1.msra.mxu0 %v60
    %100 = vmatprep.subr.mxu0 %v59
    %101 = vmatpush1.msra.mxu0 %v58
    %102 = vmatprep.subr.mxu0 %v57
    %103 = vmatpush1.msra.mxu0 %v56
    %104 = vmatprep.subr.mxu0 %v55
    %105 = vmatpush1.msra.mxu0 %v54
    %106 = vmatprep.subr.mxu0 %v53
    %107 = vmatpush1.msra.mxu0 %v52
    %108 = vmatprep.subr.mxu0 %v51
    %109 = vmatpush1.msra.mxu0 %v50
    %110 = vmatprep.subr.mxu0 %v49
    %111 = vmatpush1.msra.mxu0 %v48
    %112 = vmatprep.subr.mxu0 %v47
    %113 = vmatpush1.msra.mxu0 %v46
    %114 = vmatprep.subr.mxu0 %v45
    %115 = vmatpush1.msra.mxu0 %v44
    %116 = vmatprep.subr.mxu0 %v43
    %117 = vmatpush1.msra.mxu0 %v42
    %118 = vmatprep.subr.mxu0 0.0
    %119 = vmatpush2.msra.mxu0 0.0
    %120 = vmatprep.subr.mxu0 0.0
    %121 = vmatpush2.msra.mxu0 0.0
    %122 = vmatprep.subr.mxu0 0.0
    %123 = vmatpush2.msra.mxu0 0.0
    %124 = vmatprep.subr.mxu0 0.0
    %125 = vmatpush2.msra.mxu0 0.0
    %126 = vmatprep.subr.mxu0 0.0
    %127 = vmatpush2.msra.mxu0 0.0
    %128 = vmatprep.subr.mxu0 0.0
    %129 = vmatpush2.msra.mxu0 0.0
    %130 = vmatprep.subr.mxu0 0.0
    %131 = vmatpush2.msra.mxu0 0.0
    %132 = vmatprep.subr.mxu0 0.0
    %133 = vmatpush2.msra.mxu0 0.0
    %134 = vmatprep.subr.mxu0 0.0
    %135 = vmatpush2.msra.mxu0 0.0
    %136 = vmatprep.subr.mxu0 0.0
    %137 = vmatpush2.msra.mxu0 0.0
    %138 = vmatprep.subr.mxu0 0.0
    %139 = vmatpush2.msra.mxu0 0.0
    %140 = vmatprep.subr.mxu0 0.0
    %141 = vmatpush2.msra.mxu0 0.0
    %142 = vmatprep.subr.mxu0 0.0
    %143 = vmatpush2.msra.mxu0 0.0
    %144 = vmatprep.subr.mxu0 0.0
    %145 = vmatpush2.msra.mxu0 0.0
    %146 = vmatprep.subr.mxu0 0.0
    %147 = vmatpush2.msra.mxu0 0.0
    %148 = vmatprep.subr.mxu0 0.0
    %149 = vmatpush2.msra.mxu0 0.0
    %150 = vmatprep.mubr.f32.mxu0 0.0
    %151 = vmatmul.mubr.f32.gmra.mxu0 %v41
    %v152 = vpop.f32.mrf.mxu0
    %v153 = vadd.f32 %v79, %v152
    %v154 = vpop.f32.mrf.mxu0
    %v155 = vadd.f32 %v83, %v154
    %156 = vdwg.mxu0
    %v157 = vmax.f32 %v153, 0.0
    %v158 = vmax.f32 %v155, 0.0
    %v159 = vld [vmem:[#allocation2] sm:$0xff]
    %v160 = vld [vmem:[#allocation2 + $0x8] sm:$0xff]
    %v161 = vld [vmem:[#allocation2 + $0x10] sm:$0xff]
    %v162 = vld [vmem:[#allocation2 + $0x18] sm:$0xff]
    %v163 = vld [vmem:[#allocation2 + $0x20] sm:$0xff]
    %v164 = vld [vmem:[#allocation2 + $0x28] sm:$0xff]
    %v165 = vld [vmem:[#allocation2 + $0x30] sm:$0xff]
    %v166 = vld [vmem:[#allocation2 + $0x38] sm:$0xff]
    %v167 = vld [vmem:[#allocation2 + $0x40] sm:$0xff]
    %v168 = vld [vmem:[#allocation2 + $0x48] sm:$0xff]
    %v169 = vld [vmem:[#allocation2 + $0x50] sm:$0xff]
    %v170 = vld [vmem:[#allocation2 + $0x58] sm:$0xff]
    %v171 = vld [vmem:[#allocation2 + $0x60] sm:$0xff]
    %v172 = vld [vmem:[#allocation2 + $0x68] sm:$0xff]
    %v173 = vld [vmem:[#allocation2 + $0x70] sm:$0xff]
    %v174 = vld [vmem:[#allocation2 + $0x78] sm:$0xff]
    %v175 = vld [vmem:[#allocation2 + $0x80] sm:$0xff]
    %v176 = vld [vmem:[#allocation2 + $0x88] sm:$0xff]
    %v177 = vld [vmem:[#allocation2 + $0x90] sm:$0xff]
    %v178 = vld [vmem:[#allocation2 + $0x98] sm:$0xff]
    %v179 = vld [vmem:[#allocation2 + $0xa0] sm:$0xff]
    %v180 = vld [vmem:[#allocation2 + $0xa8] sm:$0xff]
    %v181 = vld [vmem:[#allocation2 + $0xb0] sm:$0xff]
    %v182 = vld [vmem:[#allocation2 + $0xb8] sm:$0xff]
    %v183 = vld [vmem:[#allocation2 + $0xc0] sm:$0xff]
    %v184 = vld [vmem:[#allocation2 + $0xc8] sm:$0xff]
    %v185 = vld [vmem:[#allocation2 + $0xd0] sm:$0xff]
    %v186 = vld [vmem:[#allocation2 + $0xd8] sm:$0xff]
    %v187 = vld [vmem:[#allocation2 + $0xe0] sm:$0xff]
    %v188 = vld [vmem:[#allocation2 + $0xe8] sm:$0xff]
    %v189 = vld [vmem:[#allocation2 + $0xf0] sm:$0xff]
    %v190 = vld [vmem:[#allocation2 + $0xf8] sm:$0xff]
    %v191 = vld [vmem:[#allocation2 + $0x100] sm:$0xff]
    %v192 = vld [vmem:[#allocation2 + $0x108] sm:$0xff]
    %v193 = vld [vmem:[#allocation2 + $0x110] sm:$0xff]
    %v194 = vld [vmem:[#allocation2 + $0x118] sm:$0xff]
    %v195 = vld [vmem:[#allocation2 + $0x120] sm:$0xff]
    %v196 = vld [vmem:[#allocation2 + $0x128] sm:$0xff]
    %v197 = vld [vmem:[#allocation2 + $0x130] sm:$0xff]
    %v198 = vld [vmem:[#allocation2 + $0x138] sm:$0xff]
    %v199 = vld [vmem:[#allocation2 + $0x140] sm:$0xff]
    %v200 = vld [vmem:[#allocation2 + $0x148] sm:$0xff]
    %v201 = vld [vmem:[#allocation2 + $0x150] sm:$0xff]
    %v202 = vld [vmem:[#allocation2 + $0x158] sm:$0xff]
    %v203 = vld [vmem:[#allocation2 + $0x160] sm:$0xff]
    %v204 = vld [vmem:[#allocation2 + $0x168] sm:$0xff]
    %v205 = vld [vmem:[#allocation2 + $0x170] sm:$0xff]
    %v206 = vld [vmem:[#allocation2 + $0x178] sm:$0xff]
    %v207 = vld [vmem:[#allocation2 + $0x180] sm:$0xff]
    %v208 = vld [vmem:[#allocation2 + $0x188] sm:$0xff]
    %v209 = vld [vmem:[#allocation2 + $0x190] sm:$0xff]
    %v210 = vld [vmem:[#allocation2 + $0x198] sm:$0xff]
    %v211 = vld [vmem:[#allocation2 + $0x1a0] sm:$0xff]
    %v212 = vld [vmem:[#allocation2 + $0x1a8] sm:$0xff]
    %v213 = vld [vmem:[#allocation2 + $0x1b0] sm:$0xff]
    %v214 = vld [vmem:[#allocation2 + $0x1b8] sm:$0xff]
    %v215 = vld [vmem:[#allocation2 + $0x1c0] sm:$0xff]
    %v216 = vld [vmem:[#allocation2 + $0x1c8] sm:$0xff]
    %v217 = vld [vmem:[#allocation2 + $0x1d0] sm:$0xff]
    %v218 = vld [vmem:[#allocation2 + $0x1d8] sm:$0xff]
    %v219 = vld [vmem:[#allocation2 + $0x1e0] sm:$0xff]
    %v220 = vld [vmem:[#allocation2 + $0x1e8] sm:$0xff]
    %v221 = vld [vmem:[#allocation2 + $0x1f0] sm:$0xff]
    %v222 = vld [vmem:[#allocation2 + $0x1f8] sm:$0xff]
    %v223 = vld [vmem:[%s4] sm:$0x3]
    %v225 = vlaneseq
    %v226 = vshrl.u32 %v225, 7
    %v227 = vsub.s32 0, %v226
    %v228 = vrot.slane %v223, %v227
    %v229 = vlaneseq
    %v230 = vshrl.u32 %v229, 7
    %v231 = vsub.s32 1, %v230
    %v232 = vrot.slane %v223, %v231
    %235 = vmatprep.subr.mxu0 %v190
    %236 = vmatpush1.msra.mxu0 %v189
    %237 = vmatprep.subr.mxu0 %v188
    %238 = vmatpush1.msra.mxu0 %v187
    %239 = vmatprep.subr.mxu0 %v186
    %240 = vmatpush1.msra.mxu0 %v185
    %241 = vmatprep.subr.mxu0 %v184
    %242 = vmatpush1.msra.mxu0 %v183
    %243 = vmatprep.subr.mxu0 %v182
    %244 = vmatpush1.msra.mxu0 %v181
    %245 = vmatprep.subr.mxu0 %v180
    %246 = vmatpush1.msra.mxu0 %v179
    %247 = vmatprep.subr.mxu0 %v178
    %248 = vmatpush1.msra.mxu0 %v177
    %249 = vmatprep.subr.mxu0 %v176
    %250 = vmatpush1.msra.mxu0 %v175
    %251 = vmatprep.subr.mxu0 %v174
    %252 = vmatpush1.msra.mxu0 %v173
    %253 = vmatprep.subr.mxu0 %v172
    %254 = vmatpush1.msra.mxu0 %v171
    %255 = vmatprep.subr.mxu0 %v170
    %256 = vmatpush1.msra.mxu0 %v169
    %257 = vmatprep.subr.mxu0 %v168
    %258 = vmatpush1.msra.mxu0 %v167
    %259 = vmatprep.subr.mxu0 %v166
    %260 = vmatpush1.msra.mxu0 %v165
    %261 = vmatprep.subr.mxu0 %v164
    %262 = vmatpush1.msra.mxu0 %v163
    %263 = vmatprep.subr.mxu0 %v162
    %264 = vmatpush1.msra.mxu0 %v161
    %265 = vmatprep.subr.mxu0 %v160
    %266 = vmatpush1.msra.mxu0 %v159
    %267 = vmatprep.subr.mxu0 %v222
    %268 = vmatpush2.msra.mxu0 %v221
    %269 = vmatprep.subr.mxu0 %v220
    %270 = vmatpush2.msra.mxu0 %v219
    %271 = vmatprep.subr.mxu0 %v218
    %272 = vmatpush2.msra.mxu0 %v217
    %273 = vmatprep.subr.mxu0 %v216
    %274 = vmatpush2.msra.mxu0 %v215
    %275 = vmatprep.subr.mxu0 %v214
    %276 = vmatpush2.msra.mxu0 %v213
    %277 = vmatprep.subr.mxu0 %v212
    %278 = vmatpush2.msra.mxu0 %v211
    %279 = vmatprep.subr.mxu0 %v210
    %280 = vmatpush2.msra.mxu0 %v209
    %281 = vmatprep.subr.mxu0 %v208
    %282 = vmatpush2.msra.mxu0 %v207
    %283 = vmatprep.subr.mxu0 %v206
    %284 = vmatpush2.msra.mxu0 %v205
    %285 = vmatprep.subr.mxu0 %v204
    %286 = vmatpush2.msra.mxu0 %v203
    %287 = vmatprep.subr.mxu0 %v202
    %288 = vmatpush2.msra.mxu0 %v201
    %289 = vmatprep.subr.mxu0 %v200
    %290 = vmatpush2.msra.mxu0 %v199
    %291 = vmatprep.subr.mxu0 %v198
    %292 = vmatpush2.msra.mxu0 %v197
    %293 = vmatprep.subr.mxu0 %v196
    %294 = vmatpush2.msra.mxu0 %v195
    %295 = vmatprep.subr.mxu0 %v194
    %296 = vmatpush2.msra.mxu0 %v193
    %297 = vmatprep.subr.mxu0 %v192
    %298 = vmatpush2.msra.mxu0 %v191
    %299 = vmatprep.mubr.f32.mxu0 %v158
    %300 = vmatmul.mubr.f32.gmra.mxu0 %v157
    %v301 = vpop.f32.mrf.mxu0
    %v302 = vadd.f32 %v228, %v301
    %v303 = vpop.f32.mrf.mxu0
    %v304 = vadd.f32 %v232, %v303
    %305 = vdwg.mxu0
    %v306 = vmax.f32 %v302, 0.0
    %v307 = vmax.f32 %v304, 0.0
    %v308 = vld [vmem:[%s5] sm:$0xff]
    %v309 = vld [vmem:[%s5 + $0x8] sm:$0xff]
    %v310 = vld [vmem:[%s5 + $0x10] sm:$0xff]
    %v311 = vld [vmem:[%s5 + $0x18] sm:$0xff]
    %v312 = vld [vmem:[%s5 + $0x20] sm:$0xff]
    %v313 = vld [vmem:[%s5 + $0x28] sm:$0xff]
    %v314 = vld [vmem:[%s5 + $0x30] sm:$0xff]
    %v315 = vld [vmem:[%s5 + $0x38] sm:$0xff]
    %v316 = vld [vmem:[%s5 + $0x40] sm:$0xff]
    %v317 = vld [vmem:[%s5 + $0x48] sm:$0xff]
    %v318 = vld [vmem:[%s5 + $0x50] sm:$0xff]
    %v319 = vld [vmem:[%s5 + $0x58] sm:$0xff]
    %v320 = vld [vmem:[%s5 + $0x60] sm:$0xff]
    %v321 = vld [vmem:[%s5 + $0x68] sm:$0xff]
    %v322 = vld [vmem:[%s5 + $0x70] sm:$0xff]
    %v323 = vld [vmem:[%s5 + $0x78] sm:$0xff]
    %v324 = vld [vmem:[%s5 + $0x80] sm:$0xff]
    %v325 = vld [vmem:[%s5 + $0x88] sm:$0xff]
    %v326 = vld [vmem:[%s5 + $0x90] sm:$0xff]
    %v327 = vld [vmem:[%s5 + $0x98] sm:$0xff]
    %v328 = vld [vmem:[%s5 + $0xa0] sm:$0xff]
    %v329 = vld [vmem:[%s5 + $0xa8] sm:$0xff]
    %v330 = vld [vmem:[%s5 + $0xb0] sm:$0xff]
    %v331 = vld [vmem:[%s5 + $0xb8] sm:$0xff]
    %v332 = vld [vmem:[%s5 + $0xc0] sm:$0xff]
    %v333 = vld [vmem:[%s5 + $0xc8] sm:$0xff]
    %v334 = vld [vmem:[%s5 + $0xd0] sm:$0xff]
    %v335 = vld [vmem:[%s5 + $0xd8] sm:$0xff]
    %v336 = vld [vmem:[%s5 + $0xe0] sm:$0xff]
    %v337 = vld [vmem:[%s5 + $0xe8] sm:$0xff]
    %v338 = vld [vmem:[%s5 + $0xf0] sm:$0xff]
    %v339 = vld [vmem:[%s5 + $0xf8] sm:$0xff]
    %v340 = vld [vmem:[%s6] sm:$0x1]
    %v342 = vlaneseq
    %v343 = vshrl.u32 %v342, 7
    %v344 = vsub.s32 0, %v343
    %v345 = vrot.slane %v340, %v344
    %347 = vmatprep.subr.mxu0 0.0
    %348 = vmatpush1.msra.mxu0 %v323
    %349 = vmatprep.subr.mxu0 0.0
    %350 = vmatpush1.msra.mxu0 %v322
    %351 = vmatprep.subr.mxu0 0.0
    %352 = vmatpush1.msra.mxu0 %v321
    %353 = vmatprep.subr.mxu0 0.0
    %354 = vmatpush1.msra.mxu0 %v320
    %355 = vmatprep.subr.mxu0 0.0
    %356 = vmatpush1.msra.mxu0 %v319
    %357 = vmatprep.subr.mxu0 0.0
    %358 = vmatpush1.msra.mxu0 %v318
    %359 = vmatprep.subr.mxu0 0.0
    %360 = vmatpush1.msra.mxu0 %v317
    %361 = vmatprep.subr.mxu0 0.0
    %362 = vmatpush1.msra.mxu0 %v316
    %363 = vmatprep.subr.mxu0 0.0
    %364 = vmatpush1.msra.mxu0 %v315
    %365 = vmatprep.subr.mxu0 0.0
    %366 = vmatpush1.msra.mxu0 %v314
    %367 = vmatprep.subr.mxu0 0.0
    %368 = vmatpush1.msra.mxu0 %v313
    %369 = vmatprep.subr.mxu0 0.0
    %370 = vmatpush1.msra.mxu0 %v312
    %371 = vmatprep.subr.mxu0 0.0
    %372 = vmatpush1.msra.mxu0 %v311
    %373 = vmatprep.subr.mxu0 0.0
    %374 = vmatpush1.msra.mxu0 %v310
    %375 = vmatprep.subr.mxu0 0.0
    %376 = vmatpush1.msra.mxu0 %v309
    %377 = vmatprep.subr.mxu0 0.0
    %378 = vmatpush1.msra.mxu0 %v308
    %379 = vmatprep.subr.mxu0 0.0
    %380 = vmatpush2.msra.mxu0 %v339
    %381 = vmatprep.subr.mxu0 0.0
    %382 = vmatpush2.msra.mxu0 %v338
    %383 = vmatprep.subr.mxu0 0.0
    %384 = vmatpush2.msra.mxu0 %v337
    %385 = vmatprep.subr.mxu0 0.0
    %386 = vmatpush2.msra.mxu0 %v336
    %387 = vmatprep.subr.mxu0 0.0
    %388 = vmatpush2.msra.mxu0 %v335
    %389 = vmatprep.subr.mxu0 0.0
    %390 = vmatpush2.msra.mxu0 %v334
    %391 = vmatprep.subr.mxu0 0.0
    %392 = vmatpush2.msra.mxu0 %v333
    %393 = vmatprep.subr.mxu0 0.0
    %394 = vmatpush2.msra.mxu0 %v332
    %395 = vmatprep.subr.mxu0 0.0
    %396 = vmatpush2.msra.mxu0 %v331
    %397 = vmatprep.subr.mxu0 0.0
    %398 = vmatpush2.msra.mxu0 %v330
    %399 = vmatprep.subr.mxu0 0.0
    %400 = vmatpush2.msra.mxu0 %v329
    %401 = vmatprep.subr.mxu0 0.0
    %402 = vmatpush2.msra.mxu0 %v328
    %403 = vmatprep.subr.mxu0 0.0
    %404 = vmatpush2.msra.mxu0 %v327
    %405 = vmatprep.subr.mxu0 0.0
    %406 = vmatpush2.msra.mxu0 %v326
    %407 = vmatprep.subr.mxu0 0.0
    %408 = vmatpush2.msra.mxu0 %v325
    %409 = vmatprep.subr.mxu0 0.0
    %410 = vmatpush2.msra.mxu0 %v324
    %411 = vmatprep.mubr.f32.mxu0 %v307
    %412 = vmatmul.mubr.f32.gmra.mxu0 %v306
    %v413 = vpop.f32.mrf.mxu0
    %v414 = vadd.f32 %v345, %v413
    %v415 = vpop.f32.mrf.mxu0
    %416 = vdwg.mxu0
    %vm417 = vcmask 523264
    %418 = vst.msk [vmem:[#allocation5] sm:$0xff] %vm417, %v414
    // Predicated region
    $region34: #{tpu_custom_call.1} parent=1 // pred_check
      _
    $region35: #{tpu_custom_call.1} parent=1 // pred_check_branch
      %420 = sbr.rel (0) target = $region37
    $region36: #{tpu_custom_call.1} parent=1 // pred_region
      %s422 = ssub.s32 128, 128
      %423 = vsyncadd [#allocation4], %s422
      %s425 = sshll.u32 [#allocation5], 4
      %s426 = int_to_ptr.vmem [resolvable:$true] %s425
      %428 = dma.vmem_to_hbm [thread:$0]  %s426, 128, %s7, [#allocation4]
    $region37: #{tpu_custom_call.1} parent=1 // pred_fallthru
      _
    // Predicated region
    $region38: #{tpu_custom_call.1} parent=1 // pred_check
      _
    $region39: #{tpu_custom_call.1} parent=1 // pred_check_branch
      %430 = sbr.rel (0) target = $region41
    $region40: #{tpu_custom_call.1} parent=1 // pred_region
      %431 = dma.done [#allocation4], 128
    $region41: #{tpu_custom_call.1} parent=1 // pred_fallthru
      _
    %432 = vsyncpa [#allocation3], 1
    %433 = vsyncpa [#allocation4], 1

</llo_original>
